<compile_context>
chip_gen: v7x
topology: tpu7x:2x2x1
jax: 0.10.0
libtpu: 0.0.40
codegen_flags: <defaults>
</compile_context>

<pallas_src>
import jax
import jax.numpy as jnp
from jax.experimental import pallas as pl
from jax.experimental.pallas import tpu as pltpu

PACK = 16                      # original rows packed per 128-lane slab (16 rows x 8 features)
IN_F, H1, H2, OUT_F = 8, 6, 4, 1


def _sigmoid(z):
    # exp and the approximate reciprocal both run on the EUP slot, keeping VALUs free.
    return pl.reciprocal(1.0 + jnp.exp(-z), approx=True)


def _mlp_kernel(x_ref, w1_ref, b1_ref, w2_ref, b2_ref, w3_ref, b3_ref, o_ref):
    # x tile: (tm, 128) lane-dense f32; cast operands to bf16 for full MXU rate,
    # accumulate in f32, add biases in f32. Block-diagonal weights make the packed
    # matmuls equal to 16 independent 8->6->4->1 row-MLPs per slab.
    x = x_ref[...].astype(jnp.bfloat16)
    z = jnp.dot(x, w1_ref[...], preferred_element_type=jnp.float32) + b1_ref[...]
    h = _sigmoid(z)                                                    # (tm, 96)
    z = jnp.dot(h.astype(jnp.bfloat16), w2_ref[...],
                preferred_element_type=jnp.float32) + b2_ref[...]
    h = _sigmoid(z)                                                    # (tm, 64)
    z = jnp.dot(h.astype(jnp.bfloat16), w3_ref[...],
                preferred_element_type=jnp.float32) + b3_ref[...]
    o_ref[...] = _sigmoid(z).astype(o_ref.dtype)                       # (tm, 16)
    # TODO(synk): lane-dense (tm//8, 128) output store skipped -- the needed
    # (tm,16)->(tm//8,128) in-kernel reshape is a sublane->lane relayout with
    # uncertain Mosaic lowering support; output is only ~11% of HBM bytes.


def _block_diag(w, p):
    """(din, dout) -> (p*din, p*dout) block-diagonal with p copies of w."""
    din, dout = w.shape
    eye = jnp.eye(p, dtype=w.dtype)
    return jnp.einsum("pq,io->piqo", eye, w).reshape(p * din, p * dout)


def pack_params(params):
    """One-time packing, hoisted out of the per-call forward path."""
    return {
        "w1": _block_diag(params["w1"], PACK).astype(jnp.bfloat16),  # (128, 96)
        "w2": _block_diag(params["w2"], PACK).astype(jnp.bfloat16),  # (96, 64)
        "w3": _block_diag(params["w3"], PACK).astype(jnp.bfloat16),  # (64, 16)
        "b1": jnp.tile(params["b1"], (1, PACK)),                     # (1, 96)  f32
        "b2": jnp.tile(params["b2"], (1, PACK)),                     # (1, 64)  f32
        "b3": jnp.tile(params["b3"], (1, PACK)),                     # (1, 16)  f32
    }


def mlp_forward(x, packed, *, tm_target=8192):
    """x: [N, 8] float32 -> [N, 1] float32 (uses pre-packed params from pack_params)."""
    n = x.shape[0]
    assert x.shape[1] == IN_F

    # ---- lane-dense packing WITHOUT a full padded copy ----------------------
    np_rows = -(-n // PACK)                      # ceil(N / 16) packed rows
    if n % PACK:
        # Pad only the ragged (<16 row) tail so the packed reshape is legal.
        # TODO(synk): route the tail through a tiny separate call so the aligned
        # bulk stays copy-free even for ragged N.
        pad = np_rows * PACK - n
        x = jnp.concatenate([x, jnp.zeros((pad, IN_F), x.dtype)], axis=0)
    x_p = x.reshape(np_rows, PACK * IN_F)        # free row-major reshape (no copy)

    # ---- batch tiling: big tiles amortize the ~0.35us/step overhead ---------
    tm_target = max(8, (int(tm_target) // 8) * 8)
    if np_rows <= tm_target:
        tm = np_rows                             # single block (== full array dims)
    else:
        tm = tm_target                           # multiple of 8 -> grid >= 2 (megacore)
    grid0 = pl.cdiv(np_rows, tm)                 # last block may be partial (Pallas pads)
    rows_total = grid0 * tm

    full = lambda a: pl.BlockSpec(a.shape, lambda i: (0,) * a.ndim)

    # CostEstimate reflects the padded block-diagonal MXU work actually executed.
    mxu_flops_per_row = 2 * (128 * 96 + 96 * 64 + 64 * 16)
    cost = pl.CostEstimate(
        flops=rows_total * mxu_flops_per_row,
        transcendentals=rows_total * PACK * 11 * 2,          # exp + reciprocal per sigmoid
        bytes_accessed=rows_total * 4 * (PACK * IN_F + PACK)  # x in (f32) + y out (f32)
        + 2 * (128 * 96 + 96 * 64 + 64 * 16)                  # bf16 weights
        + 4 * PACK * (H1 + H2 + OUT_F),                       # f32 biases
    )

    out = pl.pallas_call(
        _mlp_kernel,
        out_shape=jax.ShapeDtypeStruct((rows_total, PACK), jnp.float32),
        grid=(grid0,),
        in_specs=[
            pl.BlockSpec((tm, PACK * IN_F), lambda i: (i, 0)),   # x: batch-tiled
            full(packed["w1"]), full(packed["b1"]),
            full(packed["w2"]), full(packed["b2"]),
            full(packed["w3"]), full(packed["b3"]),
        ],
        out_specs=pl.BlockSpec((tm, PACK), lambda i: (i, 0)),
        compiler_params=pltpu.CompilerParams(
            dimension_semantics=("parallel",),
            vmem_limit_bytes=48 * 1024 * 1024,
        ),
        cost_estimate=cost,
    )(x_p, packed["w1"], packed["b1"], packed["w2"], packed["b2"],
      packed["w3"], packed["b3"])

    # (rows_total, 16) row-major -> (rows_total*16, 1); drop padded rows.
    out = out.reshape(rows_total * PACK, 1)
    return out[:n] if rows_total * PACK != n else out


def init_params(key):
    """Deterministic init matching torch.nn.Linear shapes (stored transposed)."""
    k1, k2, k3, k4, k5, k6 = jax.random.split(key, 6)

    def uinit(k, shape, fan_in):
        bound = 1.0 / jnp.sqrt(fan_in)
        return jax.random.uniform(k, shape, jnp.float32, -bound, bound)

    return {
        "w1": uinit(k1, (IN_F, H1), 8.0), "b1": uinit(k2, (1, H1), 8.0),
        "w2": uinit(k3, (H1, H2), 6.0),   "b2": uinit(k4, (1, H2), 6.0),
        "w3": uinit(k5, (H2, OUT_F), 4.0), "b3": uinit(k6, (1, OUT_F), 4.0),
    }


def _reference(x, p):
    h1 = jax.nn.sigmoid(x @ p["w1"] + p["b1"])
    h2 = jax.nn.sigmoid(h1 @ p["w2"] + p["b2"])
    return jax.nn.sigmoid(h2 @ p["w3"] + p["b3"])


if __name__ == "__main__":
    key = jax.random.PRNGKey(0)
    kx, kp = jax.random.split(key)
    params = init_params(kp)
    packed = pack_params(params)        # one-time packing, hoisted out of forward

    # Case 1: 16-aligned batch -> copy-free reshape path; small tm_target just to
    # exercise a multi-tile pipelined grid with a partial last block.
    n1 = 1152                           # 72 packed rows; tm=16 -> grid=5
    x1 = jax.random.normal(kx, (n1, IN_F), jnp.float32)
    out1 = jax.block_until_ready(mlp_forward(x1, packed, tm_target=16))
    ref1 = _reference(x1, params)
    assert out1.shape == (n1, 1)
    err1 = float(jnp.max(jnp.abs(out1 - ref1)))
    assert err1 < 2e-2, err1            # bf16 MXU operands -> relaxed tolerance

    # Case 2: ragged batch -> tail-only pad path, single block.
    n2 = 45
    x2 = jax.random.normal(jax.random.fold_in(kx, 1), (n2, IN_F), jnp.float32)
    out2 = jax.block_until_ready(mlp_forward(x2, packed))
    ref2 = _reference(x2, params)
    assert out2.shape == (n2, 1)
    err2 = float(jnp.max(jnp.abs(out2 - ref2)))
    assert err2 < 2e-2, err2

    print("KERNEL_OK")
</pallas_src>

<mosaic_0001>
module attributes {stable_mosaic.version = 11 : i64} {
  func.func @_mlp_kernel(%arg0: i32, %arg1: memref<16x128xf32, #tpu.memory_space<vmem>>, %arg2: memref<128x96xbf16, #tpu.memory_space<vmem>>, %arg3: memref<1x96xf32, #tpu.memory_space<vmem>>, %arg4: memref<96x64xbf16, #tpu.memory_space<vmem>>, %arg5: memref<1x64xf32, #tpu.memory_space<vmem>>, %arg6: memref<64x16xbf16, #tpu.memory_space<vmem>>, %arg7: memref<1x16xf32, #tpu.memory_space<vmem>>, %arg8: memref<16x16xf32, #tpu.memory_space<vmem>>) attributes {dimension_semantics = [#tpu.dimension_semantics<parallel>], iteration_bounds = array<i64: 5>, scalar_prefetch = 0 : i64, scratch_operands = 0 : i64, tpu.core_type = #tpu.core_type<tc>, window_params = [{transform_indices = @transform_0, window_bounds = array<i64: 16, 128>}, {pipeline_mode = #tpu.pipeline_mode<synchronous>, transform_indices = @transform_1, window_bounds = array<i64: 128, 96>}, {pipeline_mode = #tpu.pipeline_mode<synchronous>, transform_indices = @transform_2, window_bounds = array<i64: 1, 96>}, {pipeline_mode = #tpu.pipeline_mode<synchronous>, transform_indices = @transform_3, window_bounds = array<i64: 96, 64>}, {pipeline_mode = #tpu.pipeline_mode<synchronous>, transform_indices = @transform_4, window_bounds = array<i64: 1, 64>}, {pipeline_mode = #tpu.pipeline_mode<synchronous>, transform_indices = @transform_5, window_bounds = array<i64: 64, 16>}, {pipeline_mode = #tpu.pipeline_mode<synchronous>, transform_indices = @transform_6, window_bounds = array<i64: 1, 16>}, {transform_indices = @transform_7, window_bounds = array<i64: 16, 16>}]} {
    %c0 = arith.constant 0 : index
    %c0_0 = arith.constant 0 : index
    %0 = vector.load %arg1[%c0, %c0_0] : memref<16x128xf32, #tpu.memory_space<vmem>>, vector<16x128xf32>
    %1 = arith.truncf %0 : vector<16x128xf32> to vector<16x128xbf16>
    %c0_1 = arith.constant 0 : index
    %c0_2 = arith.constant 0 : index
    %2 = vector.load %arg2[%c0_1, %c0_2] : memref<128x96xbf16, #tpu.memory_space<vmem>>, vector<128x96xbf16>
    %cst = arith.constant dense<0.000000e+00> : vector<16x96xf32>
    %3 = tpu.matmul %1, %2, %cst {dimension_numbers = #tpu.dot_dimension_numbers<[1], [0], [0], [1], [0, 0, 1, 1], [], []>} : vector<16x128xbf16>, vector<128x96xbf16>, vector<16x96xf32> -> vector<16x96xf32>
    %c0_3 = arith.constant 0 : index
    %c0_4 = arith.constant 0 : index
    %4 = vector.load %arg3[%c0_3, %c0_4] : memref<1x96xf32, #tpu.memory_space<vmem>>, vector<1x96xf32>
    %5 = vector.broadcast %4 : vector<1x96xf32> to vector<16x96xf32>
    %6 = arith.addf %3, %5 : vector<16x96xf32>
    %cst_5 = arith.constant 0.000000e+00 : f32
    %7 = vector.broadcast %cst_5 : f32 to vector<16x96xf32>
    %8 = arith.subf %7, %6 : vector<16x96xf32>
    %9 = math.exp %8 : vector<16x96xf32>
    %cst_6 = arith.constant 1.000000e+00 : f32
    %10 = vector.broadcast %cst_6 : f32 to vector<16x96xf32>
    %11 = arith.addf %10, %9 : vector<16x96xf32>
    %12 = tpu.reciprocal %11 {approx = true} : vector<16x96xf32> -> vector<16x96xf32>
    %13 = arith.truncf %12 : vector<16x96xf32> to vector<16x96xbf16>
    %c0_7 = arith.constant 0 : index
    %c0_8 = arith.constant 0 : index
    %14 = vector.load %arg4[%c0_7, %c0_8] : memref<96x64xbf16, #tpu.memory_space<vmem>>, vector<96x64xbf16>
    %cst_9 = arith.constant dense<0.000000e+00> : vector<16x64xf32>
    %15 = tpu.matmul %13, %14, %cst_9 {dimension_numbers = #tpu.dot_dimension_numbers<[1], [0], [0], [1], [0, 0, 1, 1], [], []>} : vector<16x96xbf16>, vector<96x64xbf16>, vector<16x64xf32> -> vector<16x64xf32>
    %c0_10 = arith.constant 0 : index
    %c0_11 = arith.constant 0 : index
    %16 = vector.load %arg5[%c0_10, %c0_11] : memref<1x64xf32, #tpu.memory_space<vmem>>, vector<1x64xf32>
    %17 = vector.broadcast %16 : vector<1x64xf32> to vector<16x64xf32>
    %18 = arith.addf %15, %17 : vector<16x64xf32>
    %cst_12 = arith.constant 0.000000e+00 : f32
    %19 = vector.broadcast %cst_12 : f32 to vector<16x64xf32>
    %20 = arith.subf %19, %18 : vector<16x64xf32>
    %21 = math.exp %20 : vector<16x64xf32>
    %cst_13 = arith.constant 1.000000e+00 : f32
    %22 = vector.broadcast %cst_13 : f32 to vector<16x64xf32>
    %23 = arith.addf %22, %21 : vector<16x64xf32>
    %24 = tpu.reciprocal %23 {approx = true} : vector<16x64xf32> -> vector<16x64xf32>
    %25 = arith.truncf %24 : vector<16x64xf32> to vector<16x64xbf16>
    %c0_14 = arith.constant 0 : index
    %c0_15 = arith.constant 0 : index
    %26 = vector.load %arg6[%c0_14, %c0_15] : memref<64x16xbf16, #tpu.memory_space<vmem>>, vector<64x16xbf16>
    %cst_16 = arith.constant dense<0.000000e+00> : vector<16x16xf32>
    %27 = tpu.matmul %25, %26, %cst_16 {dimension_numbers = #tpu.dot_dimension_numbers<[1], [0], [0], [1], [0, 0, 1, 1], [], []>} : vector<16x64xbf16>, vector<64x16xbf16>, vector<16x16xf32> -> vector<16x16xf32>
    %c0_17 = arith.constant 0 : index
    %c0_18 = arith.constant 0 : index
    %28 = vector.load %arg7[%c0_17, %c0_18] : memref<1x16xf32, #tpu.memory_space<vmem>>, vector<1x16xf32>
    %29 = vector.broadcast %28 : vector<1x16xf32> to vector<16x16xf32>
    %30 = arith.addf %27, %29 : vector<16x16xf32>
    %cst_19 = arith.constant 0.000000e+00 : f32
    %31 = vector.broadcast %cst_19 : f32 to vector<16x16xf32>
    %32 = arith.subf %31, %30 : vector<16x16xf32>
    %33 = math.exp %32 : vector<16x16xf32>
    %cst_20 = arith.constant 1.000000e+00 : f32
    %34 = vector.broadcast %cst_20 : f32 to vector<16x16xf32>
    %35 = arith.addf %34, %33 : vector<16x16xf32>
    %36 = tpu.reciprocal %35 {approx = true} : vector<16x16xf32> -> vector<16x16xf32>
    %c0_21 = arith.constant 0 : index
    %c0_22 = arith.constant 0 : index
    %37 = vector.load %arg8[%c0_21, %c0_22] : memref<16x16xf32, #tpu.memory_space<vmem>>, vector<16x16xf32>
    tpu.vector_store %arg8[%c0_21, %c0_22], %36 {strides = array<i32>} : memref<16x16xf32, #tpu.memory_space<vmem>>, vector<16x16xf32>,
    return
  }
  func.func @transform_0(%arg0: i32) -> (i32, i32) {
    %c0_i32 = arith.constant 0 : i32
    %c0_i32_0 = arith.constant 0 : i32
    return %arg0, %c0_i32 : i32, i32
  }
  func.func @transform_1(%arg0: i32) -> (i32, i32) {
    %c0_i32 = arith.constant 0 : i32
    %c0_i32_0 = arith.constant 0 : i32
    %c0_i32_1 = arith.constant 0 : i32
    return %c0_i32, %c0_i32_0 : i32, i32
  }
  func.func @transform_2(%arg0: i32) -> (i32, i32) {
    %c0_i32 = arith.constant 0 : i32
    %c0_i32_0 = arith.constant 0 : i32
    %c0_i32_1 = arith.constant 0 : i32
    return %c0_i32, %c0_i32_0 : i32, i32
  }
  func.func @transform_3(%arg0: i32) -> (i32, i32) {
    %c0_i32 = arith.constant 0 : i32
    %c0_i32_0 = arith.constant 0 : i32
    %c0_i32_1 = arith.constant 0 : i32
    return %c0_i32, %c0_i32_0 : i32, i32
  }
  func.func @transform_4(%arg0: i32) -> (i32, i32) {
    %c0_i32 = arith.constant 0 : i32
    %c0_i32_0 = arith.constant 0 : i32
    %c0_i32_1 = arith.constant 0 : i32
    return %c0_i32, %c0_i32_0 : i32, i32
  }
  func.func @transform_5(%arg0: i32) -> (i32, i32) {
    %c0_i32 = arith.constant 0 : i32
    %c0_i32_0 = arith.constant 0 : i32
    %c0_i32_1 = arith.constant 0 : i32
    return %c0_i32, %c0_i32_0 : i32, i32
  }
  func.func @transform_6(%arg0: i32) -> (i32, i32) {
    %c0_i32 = arith.constant 0 : i32
    %c0_i32_0 = arith.constant 0 : i32
    %c0_i32_1 = arith.constant 0 : i32
    return %c0_i32, %c0_i32_0 : i32, i32
  }
  func.func @transform_7(%arg0: i32) -> (i32, i32) {
    %c0_i32 = arith.constant 0 : i32
    %c0_i32_0 = arith.constant 0 : i32
    return %arg0, %c0_i32 : i32, i32
  }
}

</mosaic_0001>

<llo_original>
// kernel: tpu_custom_call.1
$region0: #{tpu_custom_call.1}
  #allocation0 [shape = 'u32[]', space=smem, size = 0x4, offset = 0x4, fixed_abs, tag = 'smem constant byte address 0x4 - core index']
  #allocation1 [shape = 'u32[144,128]{1,0:T(1,128)}', space=vmem, size = 0x12000, scoped, tag = 'internal scratch']
  %s0 = inlined_call_operand.vmem [shape: f32[72,128], index: 0, kind: input, shape index: {}]
  %s1 = inlined_call_operand.vmem [shape: bf16[128,96], index: 1, kind: input, shape index: {}]
  %s2 = inlined_call_operand.vmem [shape: f32[1,96], index: 2, kind: input, shape index: {}]
  %s3 = inlined_call_operand.vmem [shape: bf16[96,64], index: 3, kind: input, shape index: {}]
  %s4 = inlined_call_operand.vmem [shape: f32[1,64], index: 4, kind: input, shape index: {}]
  %s5 = inlined_call_operand.vmem [shape: bf16[64,16], index: 5, kind: input, shape index: {}]
  %s6 = inlined_call_operand.vmem [shape: f32[1,16], index: 6, kind: input, shape index: {}]
  %s7 = inlined_call_operand.vmem [shape: f32[80,16], index: 7, kind: output, shape index: {}]
  %s8 = sld [smem:[#allocation0]]
  $region61: #{tpu_custom_call.1} parent=0
    _
  %s10 = ssub.s32 1, %s8
  %s11 = scalar_select 0, %s10, %s8
  loop: start=0, step=1, limit=7
  $region2: #{tpu_custom_call.1} parent=0 // loop_pre_header
    _
  $region3: #{tpu_custom_call.1} parent=0 // loop_header
    %s13 = sphi 0, %s17
    %p14 = scmp.ge.s32.totalorder %s13, 7
    %s23 = sphi 0, %s25
    %s26 = sphi 0, %s23
    %s27 = sphi 0, %s26
    %s43 = sphi 0, %s27
    %s47 = sphi 0, %s47
    %s49 = sphi 0, %s47
    %s50 = sphi 0, %s49
    %s64 = sphi 0, %s50
    %s68 = sphi 0, %s68
    %s70 = sphi 0, %s68
    %s71 = sphi 0, %s70
    %s85 = sphi 0, %s71
    %s89 = sphi 0, %s89
    %s91 = sphi 0, %s89
    %s92 = sphi 0, %s91
    %s106 = sphi 0, %s92
    %s110 = sphi 0, %s110
    %s112 = sphi 0, %s110
    %s113 = sphi 0, %s112
    %s127 = sphi 0, %s113
    %s131 = sphi 0, %s131
    %s133 = sphi 0, %s131
    %s134 = sphi 0, %s133
    %s148 = sphi 0, %s134
    %s152 = sphi 0, %s152
    %s154 = sphi 0, %s152
    %s155 = sphi 0, %s154
    %s169 = sphi 0, %s155
    %s175 = sphi 0, %s177
    %s178 = sphi 0, %s175
    %s179 = sphi 0, %s178
    %s195 = sphi 0, %s179
  $region4: #{tpu_custom_call.1} parent=0 // loop_header_branch
    %16 = sbr.rel (%p14) target = $region8
  $region5: #{tpu_custom_call.1} parent=0 // loop_body
    %s18 = ssub.s32 %s13, 1
    %s19 = ssub.s32 %s13, 2
    %s20 = sadd.s32 %s13, 1
    %s21 = ssub.s32 %s13, %s20
    %p22 = scmp.eq.s32.totalorder %s21, 0
    %s24 = sadd.s32 %s23, 1
    %s25 = scalar_select %p22, %s23, %s24
    %p28 = pneg %p22
    %p29 = scmp.eq.s32.totalorder %s13, 4
    %p30 = por %p28, %p29
    %p31 = scmp.ne.s32.totalorder %s23, %s26
    %p32 = scmp.eq.s32.totalorder %s13, 0
    %p33 = por %p31, %p32
    %p34 = scmp.ne.s32.totalorder %s23, %s26
    %p35 = scmp.eq.s32.totalorder %s18, 4
    %p36 = por %p34, %p35
    %p37 = scmp.ne.s32.totalorder %s26, %s27
    %p38 = scmp.eq.s32.totalorder %s18, 0
    %p39 = por %p37, %p38
    %p40 = scmp.ne.s32.totalorder %s26, %s27
    %p41 = scmp.eq.s32.totalorder %s19, 4
    %p42 = por %p40, %p41
    %p44 = scmp.ne.s32.totalorder %s27, %s43
    %p45 = scmp.eq.s32.totalorder %s19, 0
    %p46 = por %p44, %p45
    %s48 = sadd.s32 %s47, 1
    %p51 = scmp.eq.s32.totalorder %s13, 4
    %p52 = scmp.ne.s32.totalorder %s47, %s49
    %p53 = scmp.eq.s32.totalorder %s13, 0
    %p54 = por %p52, %p53
    %p55 = scmp.ne.s32.totalorder %s47, %s49
    %p56 = scmp.eq.s32.totalorder %s18, 4
    %p57 = por %p55, %p56
    %p58 = scmp.ne.s32.totalorder %s49, %s50
    %p59 = scmp.eq.s32.totalorder %s18, 0
    %p60 = por %p58, %p59
    %p61 = scmp.ne.s32.totalorder %s49, %s50
    %p62 = scmp.eq.s32.totalorder %s19, 4
    %p63 = por %p61, %p62
    %p65 = scmp.ne.s32.totalorder %s50, %s64
    %p66 = scmp.eq.s32.totalorder %s19, 0
    %p67 = por %p65, %p66
    %s69 = sadd.s32 %s68, 1
    %p72 = scmp.eq.s32.totalorder %s13, 4
    %p73 = scmp.ne.s32.totalorder %s68, %s70
    %p74 = scmp.eq.s32.totalorder %s13, 0
    %p75 = por %p73, %p74
    %p76 = scmp.ne.s32.totalorder %s68, %s70
    %p77 = scmp.eq.s32.totalorder %s18, 4
    %p78 = por %p76, %p77
    %p79 = scmp.ne.s32.totalorder %s70, %s71
    %p80 = scmp.eq.s32.totalorder %s18, 0
    %p81 = por %p79, %p80
    %p82 = scmp.ne.s32.totalorder %s70, %s71
    %p83 = scmp.eq.s32.totalorder %s19, 4
    %p84 = por %p82, %p83
    %p86 = scmp.ne.s32.totalorder %s71, %s85
    %p87 = scmp.eq.s32.totalorder %s19, 0
    %p88 = por %p86, %p87
    %s90 = sadd.s32 %s89, 1
    %p93 = scmp.eq.s32.totalorder %s13, 4
    %p94 = scmp.ne.s32.totalorder %s89, %s91
    %p95 = scmp.eq.s32.totalorder %s13, 0
    %p96 = por %p94, %p95
    %p97 = scmp.ne.s32.totalorder %s89, %s91
    %p98 = scmp.eq.s32.totalorder %s18, 4
    %p99 = por %p97, %p98
    %p100 = scmp.ne.s32.totalorder %s91, %s92
    %p101 = scmp.eq.s32.totalorder %s18, 0
    %p102 = por %p100, %p101
    %p103 = scmp.ne.s32.totalorder %s91, %s92
    %p104 = scmp.eq.s32.totalorder %s19, 4
    %p105 = por %p103, %p104
    %p107 = scmp.ne.s32.totalorder %s92, %s106
    %p108 = scmp.eq.s32.totalorder %s19, 0
    %p109 = por %p107, %p108
    %s111 = sadd.s32 %s110, 1
    %p114 = scmp.eq.s32.totalorder %s13, 4
    %p115 = scmp.ne.s32.totalorder %s110, %s112
    %p116 = scmp.eq.s32.totalorder %s13, 0
    %p117 = por %p115, %p116
    %p118 = scmp.ne.s32.totalorder %s110, %s112
    %p119 = scmp.eq.s32.totalorder %s18, 4
    %p120 = por %p118, %p119
    %p121 = scmp.ne.s32.totalorder %s112, %s113
    %p122 = scmp.eq.s32.totalorder %s18, 0
    %p123 = por %p121, %p122
    %p124 = scmp.ne.s32.totalorder %s112, %s113
    %p125 = scmp.eq.s32.totalorder %s19, 4
    %p126 = por %p124, %p125
    %p128 = scmp.ne.s32.totalorder %s113, %s127
    %p129 = scmp.eq.s32.totalorder %s19, 0
    %p130 = por %p128, %p129
    %s132 = sadd.s32 %s131, 1
    %p135 = scmp.eq.s32.totalorder %s13, 4
    %p136 = scmp.ne.s32.totalorder %s131, %s133
    %p137 = scmp.eq.s32.totalorder %s13, 0
    %p138 = por %p136, %p137
    %p139 = scmp.ne.s32.totalorder %s131, %s133
    %p140 = scmp.eq.s32.totalorder %s18, 4
    %p141 = por %p139, %p140
    %p142 = scmp.ne.s32.totalorder %s133, %s134
    %p143 = scmp.eq.s32.totalorder %s18, 0
    %p144 = por %p142, %p143
    %p145 = scmp.ne.s32.totalorder %s133, %s134
    %p146 = scmp.eq.s32.totalorder %s19, 4
    %p147 = por %p145, %p146
    %p149 = scmp.ne.s32.totalorder %s134, %s148
    %p150 = scmp.eq.s32.totalorder %s19, 0
    %p151 = por %p149, %p150
    %s153 = sadd.s32 %s152, 1
    %p156 = scmp.eq.s32.totalorder %s13, 4
    %p157 = scmp.ne.s32.totalorder %s152, %s154
    %p158 = scmp.eq.s32.totalorder %s13, 0
    %p159 = por %p157, %p158
    %p160 = scmp.ne.s32.totalorder %s152, %s154
    %p161 = scmp.eq.s32.totalorder %s18, 4
    %p162 = por %p160, %p161
    %p163 = scmp.ne.s32.totalorder %s154, %s155
    %p164 = scmp.eq.s32.totalorder %s18, 0
    %p165 = por %p163, %p164
    %p166 = scmp.ne.s32.totalorder %s154, %s155
    %p167 = scmp.eq.s32.totalorder %s19, 4
    %p168 = por %p166, %p167
    %p170 = scmp.ne.s32.totalorder %s155, %s169
    %p171 = scmp.eq.s32.totalorder %s19, 0
    %p172 = por %p170, %p171
    %s173 = ssub.s32 %s13, %s20
    %p174 = scmp.eq.s32.totalorder %s173, 0
    %s176 = sadd.s32 %s175, 1
    %s177 = scalar_select %p174, %s175, %s176
    %p180 = pneg %p174
    %p181 = scmp.eq.s32.totalorder %s13, 4
    %p182 = por %p180, %p181
    %p183 = scmp.ne.s32.totalorder %s175, %s178
    %p184 = scmp.eq.s32.totalorder %s13, 0
    %p185 = por %p183, %p184
    %p186 = scmp.ne.s32.totalorder %s175, %s178
    %p187 = scmp.eq.s32.totalorder %s18, 4
    %p188 = por %p186, %p187
    %p189 = scmp.ne.s32.totalorder %s178, %s179
    %p190 = scmp.eq.s32.totalorder %s18, 0
    %p191 = por %p189, %p190
    %p192 = scmp.ne.s32.totalorder %s178, %s179
    %p193 = scmp.eq.s32.totalorder %s19, 4
    %p194 = por %p192, %p193
    %p196 = scmp.ne.s32.totalorder %s179, %s195
    %p197 = scmp.eq.s32.totalorder %s19, 0
    %p198 = por %p196, %p197
    %p199 = scmp.le.s32.totalorder 1, %s13
    %p200 = scmp.lt.s32.totalorder %s13, 6
    %p201 = pnand %p199, %p200
    %p202 = pneg %p201
    // Predicated region
    $region9: #{tpu_custom_call.1} parent=5 // pred_check
      _
    $region10: #{tpu_custom_call.1} parent=5 // pred_check_branch
      %204 = sbr.rel (%p201) target = $region12
    $region11: #{tpu_custom_call.1} parent=5 // pred_region
      %s205 = ssub.s32 %s13, 1
      // Predicated region
      $region13: #{tpu_custom_call.1} parent=11 // pred_check
        %p206 = pneg %p60
      $region14: #{tpu_custom_call.1} parent=11 // pred_check_branch
        %208 = sbr.rel (%p206) target = $region16
      $region15: #{tpu_custom_call.1} parent=11 // pred_region
        _
      $region16: #{tpu_custom_call.1} parent=11 // pred_fallthru
        _
      // Predicated region
      $region17: #{tpu_custom_call.1} parent=11 // pred_check
        %p209 = pneg %p81
      $region18: #{tpu_custom_call.1} parent=11 // pred_check_branch
        %211 = sbr.rel (%p209) target = $region20
      $region19: #{tpu_custom_call.1} parent=11 // pred_region
        _
      $region20: #{tpu_custom_call.1} parent=11 // pred_fallthru
        _
      // Predicated region
      $region21: #{tpu_custom_call.1} parent=11 // pred_check
        %p212 = pneg %p102
      $region22: #{tpu_custom_call.1} parent=11 // pred_check_branch
        %214 = sbr.rel (%p212) target = $region24
      $region23: #{tpu_custom_call.1} parent=11 // pred_region
        _
      $region24: #{tpu_custom_call.1} parent=11 // pred_fallthru
        _
      // Predicated region
      $region25: #{tpu_custom_call.1} parent=11 // pred_check
        %p215 = pneg %p123
      $region26: #{tpu_custom_call.1} parent=11 // pred_check_branch
        %217 = sbr.rel (%p215) target = $region28
      $region27: #{tpu_custom_call.1} parent=11 // pred_region
        _
      $region28: #{tpu_custom_call.1} parent=11 // pred_fallthru
        _
      // Predicated region
      $region29: #{tpu_custom_call.1} parent=11 // pred_check
        %p218 = pneg %p144
      $region30: #{tpu_custom_call.1} parent=11 // pred_check_branch
        %220 = sbr.rel (%p218) target = $region32
      $region31: #{tpu_custom_call.1} parent=11 // pred_region
        _
      $region32: #{tpu_custom_call.1} parent=11 // pred_fallthru
        _
      // Predicated region
      $region33: #{tpu_custom_call.1} parent=11 // pred_check
        %p221 = pneg %p165
      $region34: #{tpu_custom_call.1} parent=11 // pred_check_branch
        %223 = sbr.rel (%p221) target = $region36
      $region35: #{tpu_custom_call.1} parent=11 // pred_region
        _
      $region36: #{tpu_custom_call.1} parent=11 // pred_fallthru
        _
    $region12: #{tpu_custom_call.1} parent=5 // pred_fallthru
      _
    %p224 = scmp.lt.s32.totalorder %s13, 5
    // Predicated region
    $region37: #{tpu_custom_call.1} parent=5 // pred_check
      %p225 = pneg %p224
    $region38: #{tpu_custom_call.1} parent=5 // pred_check_branch
      %227 = sbr.rel (%p225) target = $region40
    $region39: #{tpu_custom_call.1} parent=5 // pred_region
      // Predicated region
      $region41: #{tpu_custom_call.1} parent=39 // pred_check
        %p228 = pneg %p33
      $region42: #{tpu_custom_call.1} parent=39 // pred_check_branch
        %230 = sbr.rel (%p228) target = $region44
      $region43: #{tpu_custom_call.1} parent=39 // pred_region
        %s231 = smul.u32 2, %s13
        %s232 = ssub.s32 9, %s231
        %p233 = scmp.lt.s32.totalorder %s232, 2
        %s234 = scalar_select %p233, %s232, 2
        %s235 = smul.u32 128, %s234
        %p236 = scmp.lt.s32.totalorder %s231, 8
        %s237 = scalar_select %p236, %s231, 8
        %s238 = smul.addr %s237, 8
        %s239 = scalar_lea.vmem %s0, %s238
        %s240 = smul.u32 2, %s13
        %s241 = ssub.s32 9, %s240
        %p242 = scmp.lt.s32.totalorder %s241, 2
        %s243 = scalar_select %p242, %s241, 2
        %s244 = smul.u32 128, %s243
      $region44: #{tpu_custom_call.1} parent=39 // pred_fallthru
        _
    $region40: #{tpu_custom_call.1} parent=5 // pred_fallthru
      _
    %p245 = scmp.le.s32.totalorder 1, %s13
    %p246 = scmp.lt.s32.totalorder %s13, 6
    %p247 = pnand %p245, %p246
    %p248 = pneg %p247
    // Predicated region
    $region45: #{tpu_custom_call.1} parent=5 // pred_check
      _
    $region46: #{tpu_custom_call.1} parent=5 // pred_check_branch
      %250 = sbr.rel (%p247) target = $region48
    $region47: #{tpu_custom_call.1} parent=5 // pred_region
      %s251 = ssub.s32 %s13, 1
      %s252 = smul.u32 2, %s18
      %s253 = ssub.s32 9, %s252
      %p254 = scmp.lt.s32.totalorder %s253, 2
      %s255 = scalar_select %p254, %s253, 2
      %s256 = smul.u32 128, %s255
      %p257 = scmp.lt.s32.totalorder %s252, 8
      %s258 = scalar_select %p257, %s252, 8
      %s259 = smul.addr %s258, 8
      %s260 = scalar_lea.vmem %s0, %s259
      %p261 = pneg %p39
      %p262 = pneg %p36
      %p263 = pneg %p60
      %p264 = pneg %p57
      %p265 = pneg %p81
      %p266 = pneg %p78
      %p267 = pneg %p102
      %p268 = pneg %p99
      %p269 = pneg %p123
      %p270 = pneg %p120
      %p271 = pneg %p144
      %p272 = pneg %p141
      %p273 = pneg %p165
      %p274 = pneg %p162
      %p275 = pneg %p191
      %p276 = pneg %p188
      %s277 = smul.u32 2, %s18
      %p278 = scmp.lt.s32.totalorder %s277, 9
      %s279 = scalar_select %p278, %s277, 9
      %s280 = smul.addr %s279, 8
      %s281 = scalar_lea.vmem %s7, %s280
      %s282 = smul.u32 2, %s18
      %s283 = ssub.s32 9, %s282
      %p284 = scmp.lt.s32.totalorder %s283, 2
      %s285 = scalar_select %p284, %s283, 2
      %s286 = smul.u32 128, %s285
      %p287 = scmp.lt.s32.totalorder %s282, 8
      %s288 = scalar_select %p287, %s282, 8
      %s289 = smul.addr %s288, 8
      %s290 = scalar_lea.vmem %s0, %s289
      %s291 = smul.u32 2, %s18
      %s292 = ssub.s32 9, %s291
      %p293 = scmp.lt.s32.totalorder %s292, 2
      %s294 = scalar_select %p293, %s292, 2
      %s295 = smul.u32 128, %s294
      %s296 = smul.u32 2, %s18
      %p297 = scmp.lt.s32.totalorder %s296, 9
      %s298 = scalar_select %p297, %s296, 9
      %s299 = smul.addr %s298, 8
      %s300 = scalar_lea.vmem %s7, %s299
      %s301 = smul.u32 2, %s18
      %v303 = vld [vmem:[%s290] sm:$0xff]
      %v304 = vld [vmem:[%s290 + $0x8] sm:$0xff]
      %v305 = vpack.c.bf16 %v304, %v303
      %v306 = vld [vmem:[%s1] sm:$0xf]
      %v307 = vld [vmem:[%s1 + $0x4] sm:$0xf]
      %v308 = vld [vmem:[%s1 + $0x8] sm:$0xf]
      %v309 = vld [vmem:[%s1 + $0xc] sm:$0xf]
      %v310 = vld [vmem:[%s1 + $0x10] sm:$0xf]
      %v311 = vld [vmem:[%s1 + $0x14] sm:$0xf]
      %v312 = vld [vmem:[%s1 + $0x18] sm:$0xf]
      %v313 = vld [vmem:[%s1 + $0x1c] sm:$0xf]
      %v314 = vld [vmem:[%s1 + $0x20] sm:$0xf]
      %v315 = vld [vmem:[%s1 + $0x24] sm:$0xf]
      %v316 = vld [vmem:[%s1 + $0x28] sm:$0xf]
      %v317 = vld [vmem:[%s1 + $0x2c] sm:$0xf]
      %v318 = vld [vmem:[%s1 + $0x30] sm:$0xf]
      %v319 = vld [vmem:[%s1 + $0x34] sm:$0xf]
      %v320 = vld [vmem:[%s1 + $0x38] sm:$0xf]
      %v321 = vld [vmem:[%s1 + $0x3c] sm:$0xf]
      %v322 = vld [vmem:[%s2] sm:$0x1]
      %v324 = vlaneseq
      %v325 = vshrl.u32 %v324, 7
      %v326 = vsub.s32 0, %v325
      %v327 = vrot.slane %v322, %v326
      %v345 = vunpack.c.l.b16 %v306
      %v346 = vunpack.c.l.b16 %v307
      %v347 = vunpack.c.l.b16 %v308
      %v348 = vunpack.c.l.b16 %v309
      %v349 = vunpack.c.l.b16 %v310
      %v350 = vunpack.c.l.b16 %v311
      %v351 = vunpack.c.l.b16 %v312
      %v352 = vunpack.c.l.b16 %v313
      %v353 = vunpack.c.l.b16 %v314
      %v354 = vunpack.c.l.b16 %v315
      %v355 = vunpack.c.l.b16 %v316
      %v356 = vunpack.c.l.b16 %v317
      %v357 = vunpack.c.l.b16 %v318
      %v358 = vunpack.c.l.b16 %v319
      %v359 = vunpack.c.l.b16 %v320
      %v360 = vunpack.c.l.b16 %v321
      %v361 = vpack.c.b16 %v346, %v345
      %v362 = vpack.c.b16 %v348, %v347
      %v363 = vpack.c.b16 %v350, %v349
      %v364 = vpack.c.b16 %v352, %v351
      %v365 = vpack.c.b16 %v354, %v353
      %v366 = vpack.c.b16 %v356, %v355
      %v367 = vpack.c.b16 %v358, %v357
      %v368 = vpack.c.b16 %v360, %v359
      %377 = vmatprep.subr.bf16.mxu0 0
      %378 = vmatpush1.bf16.msra.mxu0 %v361
      %379 = vmatprep.subr.bf16.mxu0 0
      %380 = vmatpush1.bf16.msra.mxu0 %v362
      %381 = vmatprep.subr.bf16.mxu0 0
      %382 = vmatpush1.bf16.msra.mxu0 %v363
      %383 = vmatprep.subr.bf16.mxu0 0
      %384 = vmatpush1.bf16.msra.mxu0 %v364
      %385 = vmatprep.subr.bf16.mxu0 0
      %386 = vmatpush1.bf16.msra.mxu0 %v365
      %387 = vmatprep.subr.bf16.mxu0 0
      %388 = vmatpush1.bf16.msra.mxu0 %v366
      %389 = vmatprep.subr.bf16.mxu0 0
      %390 = vmatpush1.bf16.msra.mxu0 %v367
      %391 = vmatprep.subr.bf16.mxu0 0
      %392 = vmatpush1.bf16.msra.mxu0 %v368
      %393 = vmatprep.subr.bf16.mxu0 0
      %394 = vmatpush1.bf16.msra.mxu0 0
      %395 = vmatprep.subr.bf16.mxu0 0
      %396 = vmatpush1.bf16.msra.mxu0 0
      %397 = vmatprep.subr.bf16.mxu0 0
      %398 = vmatpush1.bf16.msra.mxu0 0
      %399 = vmatprep.subr.bf16.mxu0 0
      %400 = vmatpush1.bf16.msra.mxu0 0
      %401 = vmatprep.subr.bf16.mxu0 0
      %402 = vmatpush1.bf16.msra.mxu0 0
      %403 = vmatprep.subr.bf16.mxu0 0
      %404 = vmatpush1.bf16.msra.mxu0 0
      %405 = vmatprep.subr.bf16.mxu0 0
      %406 = vmatpush1.bf16.msra.mxu0 0
      %407 = vmatprep.subr.bf16.mxu0 0
      %408 = vmatpush1.bf16.msra.mxu0 0
      %409 = vmatprep.mubr.bf16.mxu0 0
      %410 = vmatmul.mubr.bf16.gmra.mrb[0].mxu0 %v305
      %v411 = vpop.f32.mrb[0].mxu0
      %v412 = vadd.f32 %v327, %v411
      %v413 = vpop.f32.mrb[0].mxu0
      %v414 = vpop.f32.mrb[0].mxu0
      %v415 = vadd.f32 %v327, %v414
      %v416 = vpop.f32.mrb[0].mxu0
      %417 = vdwg.mxu0
      %v418 = vsub.f32 0.0, %v412
      %v419 = vsub.f32 0.0, %v415
      %v420 = vmul.f32 %v418, 1.442695
      %v421 = vpow.pop %v420
      %v422 = vmul.f32 %v419, 1.442695
      %v423 = vpow.pop %v422
      %v424 = vadd.f32 %v421, 1.0
      %v425 = vadd.f32 %v423, 1.0
      %v426 = vrcp.pop %v424
      %v427 = vrcp.pop %v425
      %v428 = vpack.c.bf16 %v427, %v426
      %v429 = vld [vmem:[%s3] sm:$0xf]
      %v430 = vld [vmem:[%s3 + $0x4] sm:$0xf]
      %v431 = vld [vmem:[%s3 + $0x8] sm:$0xf]
      %v432 = vld [vmem:[%s3 + $0xc] sm:$0xf]
      %v433 = vld [vmem:[%s3 + $0x10] sm:$0xf]
      %v434 = vld [vmem:[%s3 + $0x14] sm:$0xf]
      %v435 = vld [vmem:[%s3 + $0x18] sm:$0xf]
      %v436 = vld [vmem:[%s3 + $0x1c] sm:$0xf]
      %v437 = vld [vmem:[%s3 + $0x20] sm:$0xf]
      %v438 = vld [vmem:[%s3 + $0x24] sm:$0xf]
      %v439 = vld [vmem:[%s3 + $0x28] sm:$0xf]
      %v440 = vld [vmem:[%s3 + $0x2c] sm:$0xf]
      %v441 = vld [vmem:[%s4] sm:$0x1]
      %v443 = vlaneseq
      %v444 = vshrl.u32 %v443, 7
      %v445 = vsub.s32 0, %v444
      %v446 = vrot.slane %v441, %v445
      %v460 = vunpack.c.l.b16 %v429
      %v461 = vunpack.c.l.b16 %v430
      %v462 = vunpack.c.l.b16 %v431
      %v463 = vunpack.c.l.b16 %v432
      %v464 = vunpack.c.l.b16 %v433
      %v465 = vunpack.c.l.b16 %v434
      %v466 = vunpack.c.l.b16 %v435
      %v467 = vunpack.c.l.b16 %v436
      %v468 = vunpack.c.l.b16 %v437
      %v469 = vunpack.c.l.b16 %v438
      %v470 = vunpack.c.l.b16 %v439
      %v471 = vunpack.c.l.b16 %v440
      %v472 = vpack.c.b16 %v461, %v460
      %v473 = vpack.c.b16 %v463, %v462
      %v474 = vpack.c.b16 %v465, %v464
      %v475 = vpack.c.b16 %v467, %v466
      %v476 = vpack.c.b16 %v469, %v468
      %v477 = vpack.c.b16 %v471, %v470
      %vm484 = vcmask 785408
      %v486 = vsel %vm484, %v428, 0
      %488 = vmatprep.subr.bf16.mxu0 0
      %489 = vmatpush1.bf16.msra.mxu0 %v472
      %490 = vmatprep.subr.bf16.mxu0 0
      %491 = vmatpush1.bf16.msra.mxu0 %v473
      %492 = vmatprep.subr.bf16.mxu0 0
      %493 = vmatpush1.bf16.msra.mxu0 %v474
      %494 = vmatprep.subr.bf16.mxu0 0
      %495 = vmatpush1.bf16.msra.mxu0 %v475
      %496 = vmatprep.subr.bf16.mxu0 0
      %497 = vmatpush1.bf16.msra.mxu0 %v476
      %498 = vmatprep.subr.bf16.mxu0 0
      %499 = vmatpush1.bf16.msra.mxu0 %v477
      %500 = vmatprep.subr.bf16.mxu0 0
      %501 = vmatpush1.bf16.msra.mxu0 0
      %502 = vmatprep.subr.bf16.mxu0 0
      %503 = vmatpush1.bf16.msra.mxu0 0
      %504 = vmatprep.subr.bf16.mxu0 0
      %505 = vmatpush1.bf16.msra.mxu0 0
      %506 = vmatprep.subr.bf16.mxu0 0
      %507 = vmatpush1.bf16.msra.mxu0 0
      %508 = vmatprep.subr.bf16.mxu0 0
      %509 = vmatpush1.bf16.msra.mxu0 0
      %510 = vmatprep.subr.bf16.mxu0 0
      %511 = vmatpush1.bf16.msra.mxu0 0
      %512 = vmatprep.subr.bf16.mxu0 0
      %513 = vmatpush1.bf16.msra.mxu0 0
      %514 = vmatprep.subr.bf16.mxu0 0
      %515 = vmatpush1.bf16.msra.mxu0 0
      %516 = vmatprep.subr.bf16.mxu0 0
      %517 = vmatpush1.bf16.msra.mxu0 0
      %518 = vmatprep.subr.bf16.mxu0 0
      %519 = vmatpush1.bf16.msra.mxu0 0
      %520 = vmatprep.mubr.bf16.mxu0 0
      %521 = vmatmul.mubr.bf16.gmra.mrb[0].mxu0 %v486
      %v522 = vpop.f32.mrb[0].mxu0
      %v523 = vadd.f32 %v446, %v522
      %v524 = vpop.f32.mrb[0].mxu0
      %v525 = vpop.f32.mrb[0].mxu0
      %v526 = vadd.f32 %v446, %v525
      %v527 = vpop.f32.mrb[0].mxu0
      %528 = vdwg.mxu0
      %v529 = vsub.f32 0.0, %v523
      %v530 = vsub.f32 0.0, %v526
      %v531 = vmul.f32 %v529, 1.442695
      %v532 = vpow.pop %v531
      %v533 = vmul.f32 %v530, 1.442695
      %v534 = vpow.pop %v533
      %v535 = vadd.f32 %v532, 1.0
      %v536 = vadd.f32 %v534, 1.0
      %v537 = vrcp.pop %v535
      %v538 = vrcp.pop %v536
      %v539 = vpack.c.bf16 %v538, %v537
      %v540 = vld [vmem:[%s5] sm:$0xf]
      %v541 = vld [vmem:[%s5 + $0x4] sm:$0xf]
      %v542 = vld [vmem:[%s5 + $0x8] sm:$0xf]
      %v543 = vld [vmem:[%s5 + $0xc] sm:$0xf]
      %v544 = vld [vmem:[%s5 + $0x10] sm:$0xf]
      %v545 = vld [vmem:[%s5 + $0x14] sm:$0xf]
      %v546 = vld [vmem:[%s5 + $0x18] sm:$0xf]
      %v547 = vld [vmem:[%s5 + $0x1c] sm:$0xf]
      %v548 = vld [vmem:[%s6] sm:$0x1]
      %v550 = vlaneseq
      %v551 = vshrl.u32 %v550, 7
      %v552 = vsub.s32 0, %v551
      %v553 = vrot.slane %v548, %v552
      %v563 = vunpack.c.l.b16 %v540
      %v564 = vunpack.c.l.b16 %v541
      %v565 = vunpack.c.l.b16 %v542
      %v566 = vunpack.c.l.b16 %v543
      %v567 = vunpack.c.l.b16 %v544
      %v568 = vunpack.c.l.b16 %v545
      %v569 = vunpack.c.l.b16 %v546
      %v570 = vunpack.c.l.b16 %v547
      %v571 = vpack.c.b16 %v564, %v563
      %v572 = vpack.c.b16 %v566, %v565
      %v573 = vpack.c.b16 %v568, %v567
      %v574 = vpack.c.b16 %v570, %v569
      %vm579 = vcmask 523264
      %v581 = vsel %vm579, %v539, 0
      %583 = vmatprep.subr.bf16.mxu0 0
      %584 = vmatpush1.bf16.msra.mxu0 %v571
      %585 = vmatprep.subr.bf16.mxu0 0
      %586 = vmatpush1.bf16.msra.mxu0 %v572
      %587 = vmatprep.subr.bf16.mxu0 0
      %588 = vmatpush1.bf16.msra.mxu0 %v573
      %589 = vmatprep.subr.bf16.mxu0 0
      %590 = vmatpush1.bf16.msra.mxu0 %v574
      %591 = vmatprep.subr.bf16.mxu0 0
      %592 = vmatpush1.bf16.msra.mxu0 0
      %593 = vmatprep.subr.bf16.mxu0 0
      %594 = vmatpush1.bf16.msra.mxu0 0
      %595 = vmatprep.subr.bf16.mxu0 0
      %596 = vmatpush1.bf16.msra.mxu0 0
      %597 = vmatprep.subr.bf16.mxu0 0
      %598 = vmatpush1.bf16.msra.mxu0 0
      %599 = vmatprep.subr.bf16.mxu0 0
      %600 = vmatpush1.bf16.msra.mxu0 0
      %601 = vmatprep.subr.bf16.mxu0 0
      %602 = vmatpush1.bf16.msra.mxu0 0
      %603 = vmatprep.subr.bf16.mxu0 0
      %604 = vmatpush1.bf16.msra.mxu0 0
      %605 = vmatprep.subr.bf16.mxu0 0
      %606 = vmatpush1.bf16.msra.mxu0 0
      %607 = vmatprep.subr.bf16.mxu0 0
      %608 = vmatpush1.bf16.msra.mxu0 0
      %609 = vmatprep.subr.bf16.mxu0 0
      %610 = vmatpush1.bf16.msra.mxu0 0
      %611 = vmatprep.subr.bf16.mxu0 0
      %612 = vmatpush1.bf16.msra.mxu0 0
      %613 = vmatprep.subr.bf16.mxu0 0
      %614 = vmatpush1.bf16.msra.mxu0 0
      %615 = vmatprep.mubr.bf16.mxu0 0
      %616 = vmatmul.mubr.bf16.gmra.mrb[0].mxu0 %v581
      %v617 = vpop.f32.mrb[0].mxu0
      %v618 = vadd.f32 %v553, %v617
      %v619 = vpop.f32.mrb[0].mxu0
      %v620 = vpop.f32.mrb[0].mxu0
      %v621 = vadd.f32 %v553, %v620
      %v622 = vpop.f32.mrb[0].mxu0
      %623 = vdwg.mxu0
      %v624 = vsub.f32 0.0, %v618
      %v625 = vsub.f32 0.0, %v621
      %v626 = vmul.f32 %v624, 1.442695
      %v627 = vpow.pop %v626
      %v628 = vmul.f32 %v625, 1.442695
      %v629 = vpow.pop %v628
      %v630 = vadd.f32 %v627, 1.0
      %v631 = vadd.f32 %v629, 1.0
      %v632 = vrcp.pop %v630
      %v633 = vrcp.pop %v631
      %vm634 = vcmask 130048
      %635 = vst.msk [vmem:[%s300] sm:$0xff] %vm634, %v632
      %636 = vst.msk [vmem:[%s300 + $0x8] sm:$0xff] %vm634, %v633
      %s637 = smul.u32 2, %s18
      %p638 = scmp.lt.s32.totalorder %s637, 9
      %s639 = scalar_select %p638, %s637, 9
      %s640 = smul.addr %s639, 8
      %s641 = scalar_lea.vmem %s7, %s640
      // Predicated region
      $region49: #{tpu_custom_call.1} parent=47 // pred_check
        %p642 = pneg %p188
      $region50: #{tpu_custom_call.1} parent=47 // pred_check_branch
        %644 = sbr.rel (%p642) target = $region52
      $region51: #{tpu_custom_call.1} parent=47 // pred_region
        %s645 = smul.u32 2, %s18
      $region52: #{tpu_custom_call.1} parent=47 // pred_fallthru
        _
    $region48: #{tpu_custom_call.1} parent=5 // pred_fallthru
      _
    %p646 = scmp.le.s32.totalorder 2, %s13
    // Predicated region
    $region53: #{tpu_custom_call.1} parent=5 // pred_check
      %p647 = pneg %p646
    $region54: #{tpu_custom_call.1} parent=5 // pred_check_branch
      %649 = sbr.rel (%p647) target = $region56
    $region55: #{tpu_custom_call.1} parent=5 // pred_region
      %s650 = ssub.s32 %s13, 2
      // Predicated region
      $region57: #{tpu_custom_call.1} parent=55 // pred_check
        %p651 = pneg %p194
      $region58: #{tpu_custom_call.1} parent=55 // pred_check_branch
        %653 = sbr.rel (%p651) target = $region60
      $region59: #{tpu_custom_call.1} parent=55 // pred_region
        %s654 = smul.u32 2, %s19
        %p655 = scmp.lt.s32.totalorder %s654, 9
        %s656 = scalar_select %p655, %s654, 9
        %s657 = smul.addr %s656, 8
        %s658 = scalar_lea.vmem %s7, %s657
      $region60: #{tpu_custom_call.1} parent=55 // pred_fallthru
        _
    $region56: #{tpu_custom_call.1} parent=5 // pred_fallthru
      _
  $region6: #{tpu_custom_call.1} parent=0 // loop_footer
    %s17 = sadd.s32 1, %s13
  $region7: #{tpu_custom_call.1} parent=0 // loop_footer_branch
    %12 = sbr.rel target = $region3
  $region8: #{tpu_custom_call.1} parent=0 // loop_exit
    _

</llo_original>
